<compile_context>
chip_gen: v6e
topology: v6e:2x2x1
jax: 0.10.0
libtpu: 0.0.40
codegen_flags: <defaults>
</compile_context>

<pallas_src>
import functools

import jax
import jax.numpy as jnp
from jax import lax
from jax.experimental import pallas as pl
from jax.experimental.pallas import tpu as pltpu


def _dilated_conv1d_kernel(x_ref, w_ref, o_ref):
    """One (group, batch, L-tile) step: out = W @ X on the MXU.

    x_ref: (1, 1, C_in_pg*K, TL)   im2col'd dilated taps (lane-dense L tile)
    w_ref: (1, C_out_pg, C_in_pg*K)
    o_ref: (1, 1, C_out_pg, TL)
    """
    x = x_ref[0, 0]          # (C_in_pg*K, TL)
    w = w_ref[0]             # (C_out_pg, C_in_pg*K)
    acc = jnp.dot(w, x, preferred_element_type=jnp.float32)
    o_ref[0, 0] = acc.astype(o_ref.dtype)


def _round_up(a, b):
    return ((a + b - 1) // b) * b


@functools.partial(jax.jit, static_argnames=("stride", "d", "groups"))
def cdilated1d_forward(x, weight, *, stride=1, d=1, groups=1):
    """Pallas equivalent of CDilated1d.forward(x).

    Args:
      x:      (N, C_in, L) input feature map.
      weight: (C_out, C_in // groups, K) Conv1d weight.
      stride, d, groups: static conv hyper-parameters (d = dilation).

    Returns:
      (N, C_out, L_out), matching nn.Conv1d(..., padding=((K-1)//2)*d,
      dilation=d, groups=groups, bias=False).
    """
    N, C_in, L = x.shape
    C_out, C_in_pg, K = weight.shape
    if C_in_pg * groups != C_in or C_out % groups != 0:
        raise ValueError("inconsistent channel/group configuration")
    C_out_pg = C_out // groups
    Cpk = C_in_pg * K

    pad = ((K - 1) // 2) * d
    L_out = (L + 2 * pad - d * (K - 1) - 1) // stride + 1

    # --- layout plumbing in the wrapper (pad + strided slices + reshapes) ---
    x_pad = jnp.pad(x, ((0, 0), (0, 0), (pad, pad)))
    taps = []
    for k in range(K):                                   # K is small & static
        start = k * d
        limit = start + (L_out - 1) * stride + 1
        taps.append(lax.slice(x_pad, (0, 0, start), (N, C_in, limit),
                              (1, 1, stride)))           # (N, C_in, L_out)
    x_taps = jnp.stack(taps, axis=2)                     # (N, C_in, K, L_out)
    # (ci, k) flattening order matches weight.reshape(..., C_in_pg*K).
    x_taps = x_taps.reshape(N, groups, Cpk, L_out)
    w2 = weight.reshape(groups, C_out_pg, Cpk)

    # Lane-dense L axis: pad L_out to a multiple of 128, then tile it so the
    # per-step x block stays at a few MiB (double-buffered by the pipeline).
    itemsize = jnp.dtype(x.dtype).itemsize
    l_lane = _round_up(L_out, 128)
    bytes_per_col = max(Cpk * itemsize, 1)
    tl_cap = max(128, ((2 * 1024 * 1024) // bytes_per_col) // 128 * 128)
    TL = min(l_lane, tl_cap, 2048)
    L_padded = _round_up(L_out, TL)
    n_l_tiles = L_padded // TL

    if L_padded != L_out:
        x_taps = jnp.pad(x_taps, ((0, 0), (0, 0), (0, 0), (0, L_padded - L_out)))

    out4 = pl.pallas_call(
        _dilated_conv1d_kernel,
        out_shape=jax.ShapeDtypeStruct((N, groups, C_out_pg, L_padded), x.dtype),
        grid_spec=pltpu.PrefetchScalarGridSpec(
            num_scalar_prefetch=0,
            # groups outermost -> weight block index constant across the inner
            # (N, L-tile) loops, so it stays resident in VMEM.
            grid=(groups, N, n_l_tiles),
            in_specs=[
                pl.BlockSpec((1, 1, Cpk, TL), lambda g, n, l: (n, g, 0, l)),
                pl.BlockSpec((1, C_out_pg, Cpk), lambda g, n, l: (g, 0, 0)),
            ],
            out_specs=pl.BlockSpec((1, 1, C_out_pg, TL),
                                   lambda g, n, l: (n, g, 0, l)),
        ),
        compiler_params=pltpu.CompilerParams(
            dimension_semantics=("parallel", "parallel", "parallel"),
        ),
    )(x_taps, w2)

    # Drop lane padding; groups * C_out_pg == C_out and the axes are adjacent
    # -> metadata reshape.
    out4 = out4[..., :L_out]
    return out4.reshape(N, C_out, L_out)
    # TODO(synk): bias=True path not implemented (module default is bias=False).


def _reference_conv1d(x, weight, stride, d, groups):
    K = weight.shape[-1]
    pad = ((K - 1) // 2) * d
    return lax.conv_general_dilated(
        x, weight,
        window_strides=(stride,),
        padding=[(pad, pad)],
        rhs_dilation=(d,),
        dimension_numbers=("NCH", "OIH", "NCH"),
        feature_group_count=groups,
    )


if __name__ == "__main__":
    key = jax.random.PRNGKey(0)
    k1, k2, k3, k4 = jax.random.split(key, 4)

    # Integer-valued f32 inputs: the conv is then exact under any MXU precision
    # mode (bf16 passes or full f32), so kernel vs reference must match tightly.

    # Config 1: nIn=4 -> nOut=8, kSize=3, stride=1, dilation=2, groups=1.
    N, C_in, L, C_out, K = 2, 4, 16, 8, 3
    x = jnp.round(jax.random.uniform(k1, (N, C_in, L), jnp.float32, -4.0, 4.0))
    w = jnp.round(jax.random.uniform(k2, (C_out, C_in, K), jnp.float32, -2.0, 2.0))
    out = jax.block_until_ready(cdilated1d_forward(x, w, stride=1, d=2, groups=1))
    ref = _reference_conv1d(x, w, 1, 2, 1)
    assert out.shape == ref.shape, (out.shape, ref.shape)
    assert jnp.allclose(out, ref, atol=1e-5), float(jnp.max(jnp.abs(out - ref)))

    # Config 2: grouped + strided + dilated: nIn=8 -> nOut=8, kSize=3,
    # stride=2, dilation=3, groups=2.
    N, C_in, L, C_out, K, groups = 2, 8, 32, 8, 3, 2
    x = jnp.round(jax.random.uniform(k3, (N, C_in, L), jnp.float32, -4.0, 4.0))
    w = jnp.round(jax.random.uniform(k4, (C_out, C_in // groups, K),
                                     jnp.float32, -2.0, 2.0))
    out = jax.block_until_ready(
        cdilated1d_forward(x, w, stride=2, d=3, groups=groups))
    ref = _reference_conv1d(x, w, 2, 3, groups)
    assert out.shape == ref.shape, (out.shape, ref.shape)
    assert jnp.allclose(out, ref, atol=1e-5), float(jnp.max(jnp.abs(out - ref)))

    print("KERNEL_OK")
</pallas_src>

<mosaic_0001>
module attributes {stable_mosaic.version = 11 : i64} {
  func.func @_dilated_conv1d_kernel(%arg0: i32, %arg1: i32, %arg2: i32, %arg3: memref<1x1x12x128xf32, #tpu.memory_space<vmem>>, %arg4: memref<1x8x12xf32, #tpu.memory_space<vmem>>, %arg5: memref<1x1x8x128xf32, #tpu.memory_space<vmem>>) attributes {dimension_semantics = [#tpu.dimension_semantics<parallel>, #tpu.dimension_semantics<parallel>, #tpu.dimension_semantics<parallel>], iteration_bounds = array<i64: 1, 2, 1>, scalar_prefetch = 0 : i64, scratch_operands = 0 : i64, tpu.core_type = #tpu.core_type<tc>, window_params = [{transform_indices = @transform_0, window_bounds = array<i64: 1, 1, 12, 128>}, {transform_indices = @transform_1, window_bounds = array<i64: 1, 8, 12>}, {transform_indices = @transform_2, window_bounds = array<i64: 1, 1, 8, 128>}]} {
    %c0 = arith.constant 0 : index
    %c0_0 = arith.constant 0 : index
    %c0_1 = arith.constant 0 : index
    %c0_2 = arith.constant 0 : index
    %0 = vector.load %arg3[%c0, %c0_0, %c0_1, %c0_2] : memref<1x1x12x128xf32, #tpu.memory_space<vmem>>, vector<1x1x12x128xf32>
    %1 = vector.shape_cast %0 : vector<1x1x12x128xf32> to vector<12x128xf32>
    %c0_3 = arith.constant 0 : index
    %c0_4 = arith.constant 0 : index
    %c0_5 = arith.constant 0 : index
    %2 = vector.load %arg4[%c0_3, %c0_4, %c0_5] : memref<1x8x12xf32, #tpu.memory_space<vmem>>, vector<1x8x12xf32>
    %3 = vector.shape_cast %2 : vector<1x8x12xf32> to vector<8x12xf32>
    %cst = arith.constant dense<0.000000e+00> : vector<8x128xf32>
    %4 = tpu.matmul %3, %1, %cst {dimension_numbers = #tpu.dot_dimension_numbers<[1], [0], [0], [1], [0, 0, 1, 1], [], []>} : vector<8x12xf32>, vector<12x128xf32>, vector<8x128xf32> -> vector<8x128xf32>
    %c0_6 = arith.constant 0 : index
    %c0_7 = arith.constant 0 : index
    %c0_8 = arith.constant 0 : index
    %c0_9 = arith.constant 0 : index
    %5 = vector.load %arg5[%c0_6, %c0_7, %c0_8, %c0_9] : memref<1x1x8x128xf32, #tpu.memory_space<vmem>>, vector<1x1x8x128xf32>
    %6 = vector.shape_cast %5 : vector<1x1x8x128xf32> to vector<8x128xf32>
    %7 = vector.shape_cast %4 : vector<8x128xf32> to vector<1x1x8x128xf32>
    tpu.vector_store %arg5[%c0_6, %c0_7, %c0_8, %c0_9], %7 {strides = array<i32>} : memref<1x1x8x128xf32, #tpu.memory_space<vmem>>, vector<1x1x8x128xf32>,
    return
  }
  func.func @transform_0(%arg0: i32, %arg1: i32, %arg2: i32) -> (i32, i32, i32, i32) {
    %c0_i32 = arith.constant 0 : i32
    %c0_i32_0 = arith.constant 0 : i32
    return %arg1, %arg0, %c0_i32, %arg2 : i32, i32, i32, i32
  }
  func.func @transform_1(%arg0: i32, %arg1: i32, %arg2: i32) -> (i32, i32, i32) {
    %c0_i32 = arith.constant 0 : i32
    %c0_i32_0 = arith.constant 0 : i32
    %c0_i32_1 = arith.constant 0 : i32
    return %arg0, %c0_i32, %c0_i32_0 : i32, i32, i32
  }
  func.func @transform_2(%arg0: i32, %arg1: i32, %arg2: i32) -> (i32, i32, i32, i32) {
    %c0_i32 = arith.constant 0 : i32
    %c0_i32_0 = arith.constant 0 : i32
    return %arg1, %arg0, %c0_i32, %arg2 : i32, i32, i32, i32
  }
}

</mosaic_0001>

<llo_original>
// kernel: cdilated1d_forward.1
$region0: #{cdilated1d_forward.1}
  #allocation0 [shape = 'u32[]', space=smem, size = 0x4, offset = 0x4, fixed_abs, tag = 'smem constant byte address 0x4 - core index']
  #allocation1 [shape = 'u32[144,128]{1,0:T(1,128)}', space=vmem, size = 0x12000, scoped, tag = 'internal scratch']
  %s0 = inlined_call_operand.vmem [shape: f32[2,1,12,128], index: 0, kind: input, shape index: {}]
  %s1 = inlined_call_operand.vmem [shape: f32[1,8,12], index: 1, kind: input, shape index: {}]
  %s2 = inlined_call_operand.vmem [shape: f32[2,1,8,128], index: 2, kind: output, shape index: {}]
  %s3 = sld [smem:[#allocation0]]
  $region41: #{cdilated1d_forward.1} parent=0
    _
  %s5 = ssub.s32 1, %s3
  %s6 = scalar_select 0, %s5, %s3
  loop: start=0, step=1, limit=4
  $region2: #{cdilated1d_forward.1} parent=0 // loop_pre_header
    _
  $region3: #{cdilated1d_forward.1} parent=0 // loop_header
    %s8 = sphi 0, %s12
    %p9 = scmp.ge.s32.totalorder %s8, 4
    %s15 = sphi 0, %s34
    %s16 = sphi 0, %s30
    %s17 = sphi 0, %s26
    %s18 = sphi 0, %s15
    %s19 = sphi 0, %s16
    %s20 = sphi 0, %s17
    %s21 = sphi 0, %s18
    %s22 = sphi 0, %s19
    %s23 = sphi 0, %s20
    %s41 = sphi 0, %s43
    %s44 = sphi 0, %s41
    %s45 = sphi 0, %s44
    %s61 = sphi 0, %s45
    %s67 = sphi 0, %s69
    %s70 = sphi 0, %s67
    %s71 = sphi 0, %s70
    %s87 = sphi 0, %s71
    %s97 = sphi 0, %s99
    %s100 = sphi 0, %s97
    %s101 = sphi 0, %s100
    %s117 = sphi 0, %s101
  $region4: #{cdilated1d_forward.1} parent=0 // loop_header_branch
    %11 = sbr.rel (%p9) target = $region8
  $region5: #{cdilated1d_forward.1} parent=0 // loop_body
    %s13 = ssub.s32 %s8, 1
    %s14 = ssub.s32 %s8, 2
    %s24 = sadd.s32 1, %s17
    %p25 = scmp.ge.s32.totalorder %s24, 1
    %s26 = scalar_select %p25, 0, %s24
    %s27 = sadd.s32 1, %s16
    %s28 = scalar_select %p25, %s27, %s16
    %p29 = scmp.ge.s32.totalorder %s28, 2
    %s30 = scalar_select %p29, 0, %s28
    %s31 = sadd.s32 1, %s15
    %s32 = scalar_select %p29, %s31, %s15
    %p33 = scmp.ge.s32.totalorder %s32, 1
    %s34 = scalar_select %p33, 0, %s32
    %s35 = ssub.s32 %s16, %s30
    %s36 = ssub.s32 %s15, %s34
    %s37 = sor.u32 %s35, %s36
    %s38 = ssub.s32 %s17, %s26
    %s39 = sor.u32 %s37, %s38
    %p40 = scmp.eq.s32.totalorder %s39, 0
    %s42 = sadd.s32 %s41, 1
    %s43 = scalar_select %p40, %s41, %s42
    %p46 = pneg %p40
    %p47 = scmp.eq.s32.totalorder %s8, 1
    %p48 = por %p46, %p47
    %p49 = scmp.ne.s32.totalorder %s41, %s44
    %p50 = scmp.eq.s32.totalorder %s8, 0
    %p51 = por %p49, %p50
    %p52 = scmp.ne.s32.totalorder %s41, %s44
    %p53 = scmp.eq.s32.totalorder %s13, 1
    %p54 = por %p52, %p53
    %p55 = scmp.ne.s32.totalorder %s44, %s45
    %p56 = scmp.eq.s32.totalorder %s13, 0
    %p57 = por %p55, %p56
    %p58 = scmp.ne.s32.totalorder %s44, %s45
    %p59 = scmp.eq.s32.totalorder %s14, 1
    %p60 = por %p58, %p59
    %p62 = scmp.ne.s32.totalorder %s45, %s61
    %p63 = scmp.eq.s32.totalorder %s14, 0
    %p64 = por %p62, %p63
    %s65 = ssub.s32 %s15, %s34
    %p66 = scmp.eq.s32.totalorder %s65, 0
    %s68 = sadd.s32 %s67, 1
    %s69 = scalar_select %p66, %s67, %s68
    %p72 = pneg %p66
    %p73 = scmp.eq.s32.totalorder %s8, 1
    %p74 = por %p72, %p73
    %p75 = scmp.ne.s32.totalorder %s67, %s70
    %p76 = scmp.eq.s32.totalorder %s8, 0
    %p77 = por %p75, %p76
    %p78 = scmp.ne.s32.totalorder %s67, %s70
    %p79 = scmp.eq.s32.totalorder %s13, 1
    %p80 = por %p78, %p79
    %p81 = scmp.ne.s32.totalorder %s70, %s71
    %p82 = scmp.eq.s32.totalorder %s13, 0
    %p83 = por %p81, %p82
    %p84 = scmp.ne.s32.totalorder %s70, %s71
    %p85 = scmp.eq.s32.totalorder %s14, 1
    %p86 = por %p84, %p85
    %p88 = scmp.ne.s32.totalorder %s71, %s87
    %p89 = scmp.eq.s32.totalorder %s14, 0
    %p90 = por %p88, %p89
    %s91 = ssub.s32 %s16, %s30
    %s92 = ssub.s32 %s15, %s34
    %s93 = sor.u32 %s91, %s92
    %s94 = ssub.s32 %s17, %s26
    %s95 = sor.u32 %s93, %s94
    %p96 = scmp.eq.s32.totalorder %s95, 0
    %s98 = sadd.s32 %s97, 1
    %s99 = scalar_select %p96, %s97, %s98
    %p102 = pneg %p96
    %p103 = scmp.eq.s32.totalorder %s8, 1
    %p104 = por %p102, %p103
    %p105 = scmp.ne.s32.totalorder %s97, %s100
    %p106 = scmp.eq.s32.totalorder %s8, 0
    %p107 = por %p105, %p106
    %p108 = scmp.ne.s32.totalorder %s97, %s100
    %p109 = scmp.eq.s32.totalorder %s13, 1
    %p110 = por %p108, %p109
    %p111 = scmp.ne.s32.totalorder %s100, %s101
    %p112 = scmp.eq.s32.totalorder %s13, 0
    %p113 = por %p111, %p112
    %p114 = scmp.ne.s32.totalorder %s100, %s101
    %p115 = scmp.eq.s32.totalorder %s14, 1
    %p116 = por %p114, %p115
    %p118 = scmp.ne.s32.totalorder %s101, %s117
    %p119 = scmp.eq.s32.totalorder %s14, 0
    %p120 = por %p118, %p119
    %p121 = scmp.le.s32.totalorder 1, %s8
    %p122 = scmp.lt.s32.totalorder %s8, 3
    %p123 = pnand %p121, %p122
    %p124 = pneg %p123
    // Predicated region
    $region9: #{cdilated1d_forward.1} parent=5 // pred_check
      _
    $region10: #{cdilated1d_forward.1} parent=5 // pred_check_branch
      %126 = sbr.rel (%p123) target = $region12
    $region11: #{cdilated1d_forward.1} parent=5 // pred_region
      %s127 = ssub.s32 %s8, 1
      // Predicated region
      $region13: #{cdilated1d_forward.1} parent=11 // pred_check
        %p128 = pneg %p83
      $region14: #{cdilated1d_forward.1} parent=11 // pred_check_branch
        %130 = sbr.rel (%p128) target = $region16
      $region15: #{cdilated1d_forward.1} parent=11 // pred_region
        %p131 = scmp.lt.s32.totalorder %s18, 0
        %s132 = scalar_select %p131, %s18, 0
        %s133 = smul.addr %s132, 8
        %s134 = scalar_lea.vmem %s1, %s133
      $region16: #{cdilated1d_forward.1} parent=11 // pred_fallthru
        _
    $region12: #{cdilated1d_forward.1} parent=5 // pred_fallthru
      _
    %p135 = scmp.lt.s32.totalorder %s8, 2
    // Predicated region
    $region17: #{cdilated1d_forward.1} parent=5 // pred_check
      %p136 = pneg %p135
    $region18: #{cdilated1d_forward.1} parent=5 // pred_check_branch
      %138 = sbr.rel (%p136) target = $region20
    $region19: #{cdilated1d_forward.1} parent=5 // pred_region
      // Predicated region
      $region21: #{cdilated1d_forward.1} parent=19 // pred_check
        %p139 = pneg %p51
      $region22: #{cdilated1d_forward.1} parent=19 // pred_check_branch
        %141 = sbr.rel (%p139) target = $region24
      $region23: #{cdilated1d_forward.1} parent=19 // pred_region
        %p142 = scmp.lt.s32.totalorder %s16, 1
        %s143 = scalar_select %p142, %s16, 1
        %p144 = scmp.lt.s32.totalorder %s15, 0
        %s145 = scalar_select %p144, %s15, 0
        %p146 = scmp.lt.s32.totalorder %s17, 0
        %s147 = scalar_select %p146, %s17, 0
        %s148 = smul.addr %s145, 2
        %s149 = sadd.s32 %s147, %s148
        %s150 = smul.addr %s143, 2
        %s151 = sadd.s32 %s149, %s150
        %s152 = smul.addr %s151, 8
        %s153 = scalar_lea.vmem %s0, %s152
      $region24: #{cdilated1d_forward.1} parent=19 // pred_fallthru
        _
    $region20: #{cdilated1d_forward.1} parent=5 // pred_fallthru
      _
    %p154 = scmp.le.s32.totalorder 1, %s8
    %p155 = scmp.lt.s32.totalorder %s8, 3
    %p156 = pnand %p154, %p155
    %p157 = pneg %p156
    // Predicated region
    $region25: #{cdilated1d_forward.1} parent=5 // pred_check
      _
    $region26: #{cdilated1d_forward.1} parent=5 // pred_check_branch
      %159 = sbr.rel (%p156) target = $region28
    $region27: #{cdilated1d_forward.1} parent=5 // pred_region
      %s160 = ssub.s32 %s8, 1
      %p161 = scmp.lt.s32.totalorder %s19, 1
      %s162 = scalar_select %p161, %s19, 1
      %p163 = scmp.lt.s32.totalorder %s18, 0
      %s164 = scalar_select %p163, %s18, 0
      %p165 = scmp.lt.s32.totalorder %s20, 0
      %s166 = scalar_select %p165, %s20, 0
      %s167 = smul.addr %s164, 2
      %s168 = sadd.s32 %s166, %s167
      %s169 = smul.addr %s162, 2
      %s170 = sadd.s32 %s168, %s169
      %s171 = smul.addr %s170, 8
      %s172 = scalar_lea.vmem %s0, %s171
      %p173 = pneg %p57
      %p174 = pneg %p54
      %p175 = scmp.lt.s32.totalorder %s18, 0
      %s176 = scalar_select %p175, %s18, 0
      %s177 = smul.addr %s176, 8
      %s178 = scalar_lea.vmem %s1, %s177
      %p179 = pneg %p83
      %p180 = pneg %p80
      %p181 = pneg %p113
      %p182 = pneg %p110
      %p183 = scmp.lt.s32.totalorder %s19, 1
      %s184 = scalar_select %p183, %s19, 1
      %p185 = scmp.lt.s32.totalorder %s18, 0
      %s186 = scalar_select %p185, %s18, 0
      %p187 = scmp.lt.s32.totalorder %s20, 0
      %s188 = scalar_select %p187, %s20, 0
      %s189 = sadd.s32 %s188, %s186
      %s190 = sadd.s32 %s189, %s184
      %s191 = smul.addr %s190, 8
      %s192 = scalar_lea.vmem %s2, %s191
      %p193 = scmp.lt.s32.totalorder %s19, 1
      %s194 = scalar_select %p193, %s19, 1
      %p195 = scmp.lt.s32.totalorder %s18, 0
      %s196 = scalar_select %p195, %s18, 0
      %p197 = scmp.lt.s32.totalorder %s20, 0
      %s198 = scalar_select %p197, %s20, 0
      %s199 = smul.addr %s196, 2
      %s200 = sadd.s32 %s198, %s199
      %s201 = smul.addr %s194, 2
      %s202 = sadd.s32 %s200, %s201
      %s203 = smul.addr %s202, 8
      %s204 = scalar_lea.vmem %s0, %s203
      %p205 = scmp.lt.s32.totalorder %s18, 0
      %s206 = scalar_select %p205, %s18, 0
      %s207 = smul.addr %s206, 8
      %s208 = scalar_lea.vmem %s1, %s207
      %p209 = scmp.lt.s32.totalorder %s19, 1
      %s210 = scalar_select %p209, %s19, 1
      %p211 = scmp.lt.s32.totalorder %s18, 0
      %s212 = scalar_select %p211, %s18, 0
      %p213 = scmp.lt.s32.totalorder %s20, 0
      %s214 = scalar_select %p213, %s20, 0
      %s215 = sadd.s32 %s214, %s212
      %s216 = sadd.s32 %s215, %s210
      %s217 = smul.addr %s216, 8
      %s218 = scalar_lea.vmem %s2, %s217
      %v219 = vld [vmem:[%s204] sm:$0xff]
      %v220 = vld [vmem:[%s204 + $0x8] sm:$0xf]
      %v221 = vld [vmem:[%s208] sm:$0xff]
      %vm222 = vcmask 97280
      %v224 = vsel %vm222, %v221, 0
      %vm226 = vcmask 1043456
      %v228 = vsel %vm226, %v220, 0
      %230 = vmatprep.subr.mxu0 0.0
      %231 = vmatpush1.msra.mxu0 0.0
      %232 = vmatprep.subr.mxu0 0.0
      %233 = vmatpush1.msra.mxu0 0.0
      %234 = vmatprep.subr.mxu0 0.0
      %235 = vmatpush1.msra.mxu0 0.0
      %236 = vmatprep.subr.mxu0 0.0
      %237 = vmatpush1.msra.mxu0 0.0
      %238 = vmatprep.subr.mxu0 0.0
      %239 = vmatpush1.msra.mxu0 0.0
      %240 = vmatprep.subr.mxu0 0.0
      %241 = vmatpush1.msra.mxu0 0.0
      %242 = vmatprep.subr.mxu0 0.0
      %243 = vmatpush1.msra.mxu0 0.0
      %244 = vmatprep.subr.mxu0 0.0
      %245 = vmatpush1.msra.mxu0 0.0
      %246 = vmatprep.subr.mxu0 0.0
      %247 = vmatpush1.msra.mxu0 0.0
      %248 = vmatprep.subr.mxu0 0.0
      %249 = vmatpush1.msra.mxu0 0.0
      %250 = vmatprep.subr.mxu0 0.0
      %251 = vmatpush1.msra.mxu0 0.0
      %252 = vmatprep.subr.mxu0 0.0
      %253 = vmatpush1.msra.mxu0 0.0
      %254 = vmatprep.subr.mxu0 0.0
      %255 = vmatpush1.msra.mxu0 0.0
      %256 = vmatprep.subr.mxu0 0.0
      %257 = vmatpush1.msra.mxu0 0.0
      %258 = vmatprep.subr.mxu0 0.0
      %259 = vmatpush1.msra.mxu0 %v228
      %260 = vmatprep.subr.mxu0 0.0
      %261 = vmatpush1.msra.mxu0 %v219
      %262 = vmatprep.subr.mxu0 0.0
      %263 = vmatpush2.msra.mxu0 0.0
      %264 = vmatprep.subr.mxu0 0.0
      %265 = vmatpush2.msra.mxu0 0.0
      %266 = vmatprep.subr.mxu0 0.0
      %267 = vmatpush2.msra.mxu0 0.0
      %268 = vmatprep.subr.mxu0 0.0
      %269 = vmatpush2.msra.mxu0 0.0
      %270 = vmatprep.subr.mxu0 0.0
      %271 = vmatpush2.msra.mxu0 0.0
      %272 = vmatprep.subr.mxu0 0.0
      %273 = vmatpush2.msra.mxu0 0.0
      %274 = vmatprep.subr.mxu0 0.0
      %275 = vmatpush2.msra.mxu0 0.0
      %276 = vmatprep.subr.mxu0 0.0
      %277 = vmatpush2.msra.mxu0 0.0
      %278 = vmatprep.subr.mxu0 0.0
      %279 = vmatpush2.msra.mxu0 0.0
      %280 = vmatprep.subr.mxu0 0.0
      %281 = vmatpush2.msra.mxu0 0.0
      %282 = vmatprep.subr.mxu0 0.0
      %283 = vmatpush2.msra.mxu0 0.0
      %284 = vmatprep.subr.mxu0 0.0
      %285 = vmatpush2.msra.mxu0 0.0
      %286 = vmatprep.subr.mxu0 0.0
      %287 = vmatpush2.msra.mxu0 0.0
      %288 = vmatprep.subr.mxu0 0.0
      %289 = vmatpush2.msra.mxu0 0.0
      %290 = vmatprep.subr.mxu0 0.0
      %291 = vmatpush2.msra.mxu0 0.0
      %292 = vmatprep.subr.mxu0 0.0
      %293 = vmatpush2.msra.mxu0 0.0
      %294 = vmatprep.mubr.f32.mxu0 0.0
      %295 = vmatmul.mubr.f32.gmra.mxu0 %v224
      %v296 = vpop.f32.mrf.mxu0
      %v297 = vadd.f32 0.0, %v296
      %v298 = vpop.f32.mrf.mxu0
      %299 = vdwg.mxu0
      %300 = vst [vmem:[%s218] sm:$0xff] %v297
      %p301 = scmp.lt.s32.totalorder %s19, 1
      %s302 = scalar_select %p301, %s19, 1
      %p303 = scmp.lt.s32.totalorder %s18, 0
      %s304 = scalar_select %p303, %s18, 0
      %p305 = scmp.lt.s32.totalorder %s20, 0
      %s306 = scalar_select %p305, %s20, 0
      %s307 = sadd.s32 %s306, %s304
      %s308 = sadd.s32 %s307, %s302
      %s309 = smul.addr %s308, 8
      %s310 = scalar_lea.vmem %s2, %s309
      // Predicated region
      $region29: #{cdilated1d_forward.1} parent=27 // pred_check
        %p311 = pneg %p110
      $region30: #{cdilated1d_forward.1} parent=27 // pred_check_branch
        %313 = sbr.rel (%p311) target = $region32
      $region31: #{cdilated1d_forward.1} parent=27 // pred_region
        _
      $region32: #{cdilated1d_forward.1} parent=27 // pred_fallthru
        _
    $region28: #{cdilated1d_forward.1} parent=5 // pred_fallthru
      _
    %p314 = scmp.le.s32.totalorder 2, %s8
    // Predicated region
    $region33: #{cdilated1d_forward.1} parent=5 // pred_check
      %p315 = pneg %p314
    $region34: #{cdilated1d_forward.1} parent=5 // pred_check_branch
      %317 = sbr.rel (%p315) target = $region36
    $region35: #{cdilated1d_forward.1} parent=5 // pred_region
      %s318 = ssub.s32 %s8, 2
      // Predicated region
      $region37: #{cdilated1d_forward.1} parent=35 // pred_check
        %p319 = pneg %p116
      $region38: #{cdilated1d_forward.1} parent=35 // pred_check_branch
        %321 = sbr.rel (%p319) target = $region40
      $region39: #{cdilated1d_forward.1} parent=35 // pred_region
        %p322 = scmp.lt.s32.totalorder %s22, 1
        %s323 = scalar_select %p322, %s22, 1
        %p324 = scmp.lt.s32.totalorder %s21, 0
        %s325 = scalar_select %p324, %s21, 0
        %p326 = scmp.lt.s32.totalorder %s23, 0
        %s327 = scalar_select %p326, %s23, 0
        %s328 = sadd.s32 %s327, %s325
        %s329 = sadd.s32 %s328, %s323
        %s330 = smul.addr %s329, 8
        %s331 = scalar_lea.vmem %s2, %s330
      $region40: #{cdilated1d_forward.1} parent=35 // pred_fallthru
        _
    $region36: #{cdilated1d_forward.1} parent=5 // pred_fallthru
      _
  $region6: #{cdilated1d_forward.1} parent=0 // loop_footer
    %s12 = sadd.s32 1, %s8
  $region7: #{cdilated1d_forward.1} parent=0 // loop_footer_branch
    %7 = sbr.rel target = $region3
  $region8: #{cdilated1d_forward.1} parent=0 // loop_exit
    _

</llo_original>
